<compile_context>
chip_gen: v6e
topology: v6e:2x2x1
jax: 0.10.0
libtpu: 0.0.40
codegen_flags: <defaults>
</compile_context>

<pallas_src>
import math

import jax
import jax.numpy as jnp
from jax.experimental import pallas as pl
from jax.experimental.pallas import tpu as pltpu

DATA_DIM = 32      # generator output features
DIM = 64           # hidden width
LATENT_DIM = 16    # stand-in for args.latent_dim
PAD = 128          # lane-dense padded width for the resident weight stack
N_LAYERS = 4
MAX_TILE_B = 4096  # sweep 512/1024/2048/4096; ~10 MiB VMEM at 4096


def _generator_kernel(x_ref, w_ref, b_ref, o_ref):
    """Fused 4-layer MLP on one (tile_b, LATENT_DIM) batch tile.

    x_ref : (tile_b, LATENT_DIM)  f32   raw latents (cast to bf16 here)
    w_ref : (4, 128, 128)         bf16  stacked, zero-padded weights (resident)
    b_ref : (4, 1, 128)           f32   stacked, zero-padded biases  (resident)
    o_ref : (tile_b, DATA_DIM)    f32   narrow output (no wrapper slice needed)
    """
    h = x_ref[...].astype(jnp.bfloat16)                       # (tile_b, 16) bf16

    # Layer 0: K = LATENT_DIM via a static sublane slice of the resident weight.
    w0 = w_ref[0][:LATENT_DIM, :]                             # (16, 128) bf16
    acc = jnp.dot(h, w0, preferred_element_type=jnp.float32) + b_ref[0]
    h = jnp.maximum(acc, 0.0).astype(jnp.bfloat16)            # bf16 for next MXU pass

    # Hidden layers 1..2 (unrolled at trace time).
    for layer in range(1, N_LAYERS - 1):
        acc = jnp.dot(h, w_ref[layer],
                      preferred_element_type=jnp.float32) + b_ref[layer]
        h = jnp.maximum(acc, 0.0).astype(jnp.bfloat16)

    # Output layer: padded cols of the weight/bias are exactly zero, so the
    # first DATA_DIM columns of the padded result are the real output.
    acc = jnp.dot(h, w_ref[N_LAYERS - 1],
                  preferred_element_type=jnp.float32) + b_ref[N_LAYERS - 1]
    o_ref[...] = acc[:, :DATA_DIM]


def pack_generator_params(params):
    """Stack + zero-pad per-layer (w, b) into fused, lane-dense arrays.

    Returns (w_all [4,128,128] bf16, b_all [4,1,128] f32). Zero padding is
    exact: padded rows/cols/lanes stay zero through every matmul/ReLU."""
    w_all = jnp.zeros((N_LAYERS, PAD, PAD), jnp.float32)
    b_all = jnp.zeros((N_LAYERS, 1, PAD), jnp.float32)
    for i, (w, b) in enumerate(params):
        fi, fo = w.shape
        w_all = w_all.at[i, :fi, :fo].set(w)
        b_all = b_all.at[i, :, :fo].set(b)
    return w_all.astype(jnp.bfloat16), b_all


def _round_up(x, m):
    return ((x + m - 1) // m) * m


def _pick_tile(batch, max_tile=MAX_TILE_B):
    """Batch tile: as large as possible (<= max_tile) while giving >= 2
    'parallel' grid steps for large batches (v7x megacore), rows a multiple
    of 8 (sublane alignment), and never larger than the (8-rounded) batch."""
    tile = min(max_tile, _round_up(pl.cdiv(batch, 2), 128))
    tile = min(tile, _round_up(batch, 8))
    return max(tile, 8)


def generator_forward(x, w_all, b_all, *, tile_b=None):
    """x: [B, LATENT_DIM] float32 -> [B, DATA_DIM] float32."""
    B = x.shape[0]
    if tile_b is None:
        tile_b = _pick_tile(B)
    n_tiles = pl.cdiv(B, tile_b)   # ragged last tile handled by edge-block masking

    return pl.pallas_call(
        _generator_kernel,
        out_shape=jax.ShapeDtypeStruct((B, DATA_DIM), jnp.float32),
        grid=(n_tiles,),
        in_specs=[
            # activations: last dim = full array dim (16), so (8,128) rule holds
            pl.BlockSpec((tile_b, LATENT_DIM), lambda i: (i, 0)),
            # weights / biases: constant index_map -> DMA'd once, VMEM-resident
            pl.BlockSpec((N_LAYERS, PAD, PAD), lambda i: (0, 0, 0)),
            pl.BlockSpec((N_LAYERS, 1, PAD), lambda i: (0, 0, 0)),
        ],
        # narrow output block: last dim = full array dim (32)
        out_specs=pl.BlockSpec((tile_b, DATA_DIM), lambda i: (i, 0)),
        compiler_params=pltpu.CompilerParams(
            dimension_semantics=("parallel",),
            vmem_limit_bytes=32 * 1024 * 1024),   # big tiles fit on v5e too
    )(x, w_all, b_all)


def _kaiming_uniform(key, fan_in, fan_out):
    """kaiming_uniform_(nonlinearity='relu') ('he' init): bound = sqrt(6/fan_in).

    Stored as [fan_in, fan_out] (already transposed for x @ W)."""
    bound = math.sqrt(6.0 / fan_in)
    return jax.random.uniform(key, (fan_in, fan_out), jnp.float32, -bound, bound)


def _bias_uniform(key, fan_in, fan_out):
    """PyTorch Linear default bias init: U(-1/sqrt(fan_in), 1/sqrt(fan_in))."""
    bound = 1.0 / math.sqrt(fan_in)
    return jax.random.uniform(key, (1, fan_out), jnp.float32, -bound, bound)


def init_generator_params(key):
    dims = [(LATENT_DIM, DIM), (DIM, DIM), (DIM, DIM), (DIM, DATA_DIM)]
    params = []
    for i, (fi, fo) in enumerate(dims):
        kw, kb = jax.random.split(jax.random.fold_in(key, i))
        params.append((_kaiming_uniform(kw, fi, fo), _bias_uniform(kb, fi, fo)))
    return params


if __name__ == "__main__":
    key = jax.random.PRNGKey(0)
    k_x, k_p = jax.random.split(key)

    params = init_generator_params(k_p)
    w_all, b_all = pack_generator_params(params)

    def reference_bf16(x):
        # Same math with the same bf16-operand / f32-accumulate casts, in plain
        # JAX (bf16 operands mean an f32-tight tolerance does not apply).
        h = x.astype(jnp.bfloat16)
        for i, (w, b) in enumerate(params):
            h = jnp.dot(h, w.astype(jnp.bfloat16),
                        preferred_element_type=jnp.float32) + b
            if i < N_LAYERS - 1:
                h = jnp.maximum(h, 0.0).astype(jnp.bfloat16)
        return h

    # batch=8    : tiny ragged single tile (tile_b=8)
    # batch=260  : 2 grid steps with a ragged (masked) edge block
    # batch=1024 : 2 full 'parallel' grid steps (tile_b=512)
    for batch in (8, 260, 1024):
        x = jax.random.normal(jax.random.fold_in(k_x, batch),
                              (batch, LATENT_DIM), jnp.float32)
        out = generator_forward(x, w_all, b_all)
        jax.block_until_ready(out)

        ref = reference_bf16(x)
        assert out.shape == (batch, DATA_DIM)
        assert jnp.allclose(out, ref, atol=2e-2, rtol=2e-2), (
            "max abs err", float(jnp.max(jnp.abs(out - ref))))

    print("KERNEL_OK")
</pallas_src>

<mosaic_0001>
module attributes {stable_mosaic.version = 11 : i64} {
  func.func @_generator_kernel(%arg0: i32, %arg1: memref<8x16xf32, #tpu.memory_space<vmem>>, %arg2: memref<4x128x128xbf16, #tpu.memory_space<vmem>>, %arg3: memref<4x1x128xf32, #tpu.memory_space<vmem>>, %arg4: memref<8x32xf32, #tpu.memory_space<vmem>>) attributes {dimension_semantics = [#tpu.dimension_semantics<parallel>], iteration_bounds = array<i64: 1>, scalar_prefetch = 0 : i64, scratch_operands = 0 : i64, tpu.core_type = #tpu.core_type<tc>, window_params = [{transform_indices = @transform_0, window_bounds = array<i64: 8, 16>}, {pipeline_mode = #tpu.pipeline_mode<synchronous>, transform_indices = @transform_1, window_bounds = array<i64: 4, 128, 128>}, {pipeline_mode = #tpu.pipeline_mode<synchronous>, transform_indices = @transform_2, window_bounds = array<i64: 4, 1, 128>}, {transform_indices = @transform_3, window_bounds = array<i64: 8, 32>}]} {
    %c0 = arith.constant 0 : index
    %c0_0 = arith.constant 0 : index
    %0 = vector.load %arg1[%c0, %c0_0] : memref<8x16xf32, #tpu.memory_space<vmem>>, vector<8x16xf32>
    %1 = arith.truncf %0 : vector<8x16xf32> to vector<8x16xbf16>
    %c0_1 = arith.constant 0 : index
    %c0_2 = arith.constant 0 : index
    %c0_3 = arith.constant 0 : index
    %2 = vector.load %arg2[%c0_1, %c0_2, %c0_3] : memref<4x128x128xbf16, #tpu.memory_space<vmem>>, vector<1x128x128xbf16>
    %3 = vector.shape_cast %2 : vector<1x128x128xbf16> to vector<128x128xbf16>
    %4 = vector.extract_strided_slice %3 {offsets = [0, 0], sizes = [16, 128], strides = [1, 1]} : vector<128x128xbf16> to vector<16x128xbf16>
    %cst = arith.constant dense<0.000000e+00> : vector<8x128xf32>
    %5 = tpu.matmul %1, %4, %cst {dimension_numbers = #tpu.dot_dimension_numbers<[1], [0], [0], [1], [0, 0, 1, 1], [], []>} : vector<8x16xbf16>, vector<16x128xbf16>, vector<8x128xf32> -> vector<8x128xf32>
    %c0_4 = arith.constant 0 : index
    %c0_5 = arith.constant 0 : index
    %c0_6 = arith.constant 0 : index
    %6 = vector.load %arg3[%c0_4, %c0_5, %c0_6] : memref<4x1x128xf32, #tpu.memory_space<vmem>>, vector<1x1x128xf32>
    %7 = vector.shape_cast %6 : vector<1x1x128xf32> to vector<1x128xf32>
    %8 = vector.broadcast %7 : vector<1x128xf32> to vector<8x128xf32>
    %9 = arith.addf %5, %8 : vector<8x128xf32>
    %cst_7 = arith.constant 0.000000e+00 : f32
    %10 = vector.broadcast %cst_7 : f32 to vector<8x128xf32>
    %11 = arith.maximumf %9, %10 : vector<8x128xf32>
    %12 = arith.truncf %11 : vector<8x128xf32> to vector<8x128xbf16>
    %c1 = arith.constant 1 : index
    %c0_8 = arith.constant 0 : index
    %c0_9 = arith.constant 0 : index
    %13 = vector.load %arg2[%c1, %c0_8, %c0_9] : memref<4x128x128xbf16, #tpu.memory_space<vmem>>, vector<1x128x128xbf16>
    %14 = vector.shape_cast %13 : vector<1x128x128xbf16> to vector<128x128xbf16>
    %cst_10 = arith.constant dense<0.000000e+00> : vector<8x128xf32>
    %15 = tpu.matmul %12, %14, %cst_10 {dimension_numbers = #tpu.dot_dimension_numbers<[1], [0], [0], [1], [0, 0, 1, 1], [], []>} : vector<8x128xbf16>, vector<128x128xbf16>, vector<8x128xf32> -> vector<8x128xf32>
    %c1_11 = arith.constant 1 : index
    %c0_12 = arith.constant 0 : index
    %c0_13 = arith.constant 0 : index
    %16 = vector.load %arg3[%c1_11, %c0_12, %c0_13] : memref<4x1x128xf32, #tpu.memory_space<vmem>>, vector<1x1x128xf32>
    %17 = vector.shape_cast %16 : vector<1x1x128xf32> to vector<1x128xf32>
    %18 = vector.broadcast %17 : vector<1x128xf32> to vector<8x128xf32>
    %19 = arith.addf %15, %18 : vector<8x128xf32>
    %cst_14 = arith.constant 0.000000e+00 : f32
    %20 = vector.broadcast %cst_14 : f32 to vector<8x128xf32>
    %21 = arith.maximumf %19, %20 : vector<8x128xf32>
    %22 = arith.truncf %21 : vector<8x128xf32> to vector<8x128xbf16>
    %c2 = arith.constant 2 : index
    %c0_15 = arith.constant 0 : index
    %c0_16 = arith.constant 0 : index
    %23 = vector.load %arg2[%c2, %c0_15, %c0_16] : memref<4x128x128xbf16, #tpu.memory_space<vmem>>, vector<1x128x128xbf16>
    %24 = vector.shape_cast %23 : vector<1x128x128xbf16> to vector<128x128xbf16>
    %cst_17 = arith.constant dense<0.000000e+00> : vector<8x128xf32>
    %25 = tpu.matmul %22, %24, %cst_17 {dimension_numbers = #tpu.dot_dimension_numbers<[1], [0], [0], [1], [0, 0, 1, 1], [], []>} : vector<8x128xbf16>, vector<128x128xbf16>, vector<8x128xf32> -> vector<8x128xf32>
    %c2_18 = arith.constant 2 : index
    %c0_19 = arith.constant 0 : index
    %c0_20 = arith.constant 0 : index
    %26 = vector.load %arg3[%c2_18, %c0_19, %c0_20] : memref<4x1x128xf32, #tpu.memory_space<vmem>>, vector<1x1x128xf32>
    %27 = vector.shape_cast %26 : vector<1x1x128xf32> to vector<1x128xf32>
    %28 = vector.broadcast %27 : vector<1x128xf32> to vector<8x128xf32>
    %29 = arith.addf %25, %28 : vector<8x128xf32>
    %cst_21 = arith.constant 0.000000e+00 : f32
    %30 = vector.broadcast %cst_21 : f32 to vector<8x128xf32>
    %31 = arith.maximumf %29, %30 : vector<8x128xf32>
    %32 = arith.truncf %31 : vector<8x128xf32> to vector<8x128xbf16>
    %c3 = arith.constant 3 : index
    %c0_22 = arith.constant 0 : index
    %c0_23 = arith.constant 0 : index
    %33 = vector.load %arg2[%c3, %c0_22, %c0_23] : memref<4x128x128xbf16, #tpu.memory_space<vmem>>, vector<1x128x128xbf16>
    %34 = vector.shape_cast %33 : vector<1x128x128xbf16> to vector<128x128xbf16>
    %cst_24 = arith.constant dense<0.000000e+00> : vector<8x128xf32>
    %35 = tpu.matmul %32, %34, %cst_24 {dimension_numbers = #tpu.dot_dimension_numbers<[1], [0], [0], [1], [0, 0, 1, 1], [], []>} : vector<8x128xbf16>, vector<128x128xbf16>, vector<8x128xf32> -> vector<8x128xf32>
    %c3_25 = arith.constant 3 : index
    %c0_26 = arith.constant 0 : index
    %c0_27 = arith.constant 0 : index
    %36 = vector.load %arg3[%c3_25, %c0_26, %c0_27] : memref<4x1x128xf32, #tpu.memory_space<vmem>>, vector<1x1x128xf32>
    %37 = vector.shape_cast %36 : vector<1x1x128xf32> to vector<1x128xf32>
    %38 = vector.broadcast %37 : vector<1x128xf32> to vector<8x128xf32>
    %39 = arith.addf %35, %38 : vector<8x128xf32>
    %40 = vector.extract_strided_slice %39 {offsets = [0, 0], sizes = [8, 32], strides = [1, 1]} : vector<8x128xf32> to vector<8x32xf32>
    %c0_28 = arith.constant 0 : index
    %c0_29 = arith.constant 0 : index
    %41 = vector.load %arg4[%c0_28, %c0_29] : memref<8x32xf32, #tpu.memory_space<vmem>>, vector<8x32xf32>
    tpu.vector_store %arg4[%c0_28, %c0_29], %40 {strides = array<i32>} : memref<8x32xf32, #tpu.memory_space<vmem>>, vector<8x32xf32>,
    return
  }
  func.func @transform_0(%arg0: i32) -> (i32, i32) {
    %c0_i32 = arith.constant 0 : i32
    %c0_i32_0 = arith.constant 0 : i32
    return %arg0, %c0_i32 : i32, i32
  }
  func.func @transform_1(%arg0: i32) -> (i32, i32, i32) {
    %c0_i32 = arith.constant 0 : i32
    %c0_i32_0 = arith.constant 0 : i32
    %c0_i32_1 = arith.constant 0 : i32
    %c0_i32_2 = arith.constant 0 : i32
    return %c0_i32, %c0_i32_0, %c0_i32_1 : i32, i32, i32
  }
  func.func @transform_2(%arg0: i32) -> (i32, i32, i32) {
    %c0_i32 = arith.constant 0 : i32
    %c0_i32_0 = arith.constant 0 : i32
    %c0_i32_1 = arith.constant 0 : i32
    %c0_i32_2 = arith.constant 0 : i32
    return %c0_i32, %c0_i32_0, %c0_i32_1 : i32, i32, i32
  }
  func.func @transform_3(%arg0: i32) -> (i32, i32) {
    %c0_i32 = arith.constant 0 : i32
    %c0_i32_0 = arith.constant 0 : i32
    return %arg0, %c0_i32 : i32, i32
  }
}

</mosaic_0001>

<llo_original>
// kernel: tpu_custom_call.1
$region0: #{tpu_custom_call.1}
  #allocation0 [shape = 'u32[]', space=smem, size = 0x4, offset = 0x4, fixed_abs, tag = 'smem constant byte address 0x4 - core index']
  #allocation1 [shape = 'u32[144,128]{1,0:T(1,128)}', space=vmem, size = 0x12000, scoped, tag = 'internal scratch']
  %s0 = inlined_call_operand.hbm [shape: f32[8,16], index: 0, kind: input, shape index: {}]
  %s1 = inlined_call_operand.hbm [shape: bf16[4,128,128], index: 1, kind: input, shape index: {}]
  %s2 = inlined_call_operand.hbm [shape: f32[4,1,128], index: 2, kind: input, shape index: {}]
  %s3 = inlined_call_operand.hbm [shape: f32[8,32], index: 3, kind: output, shape index: {}]
  %s4 = sld [smem:[#allocation0]]
  $region34: #{tpu_custom_call.1} parent=0
    _
  %s6 = ssub.s32 1, %s4
  %s7 = scalar_select 0, %s6, %s4
  $region1: #{tpu_custom_call.1} parent=0
    #allocation2 [shape = 'u8[4096]{0}', space=vmem, size = 0x1000, scoped, tag = 'input window, operand 0, single buffered']
    #allocation3 [shape = 's32[1]{0}', space=sflag, size = 0x4, scoped, tag = 'scoped memory for tpu_custom_call.1']
    #allocation4 [shape = 's32[1]{0}', space=sflag, size = 0x4, scoped, tag = 'scoped memory for tpu_custom_call.1']
    #allocation5 [shape = 'u8[131072]{0}', space=vmem, size = 0x20000, scoped, tag = 'input window, operand 1, single buffered']
    #allocation6 [shape = 's32[1]{0}', space=sflag, size = 0x4, scoped, tag = 'scoped memory for tpu_custom_call.1']
    #allocation7 [shape = 'u8[2048]{0}', space=vmem, size = 0x800, scoped, tag = 'input window, operand 2, single buffered']
    #allocation8 [shape = 'u8[4096]{0}', space=vmem, size = 0x1000, scoped, tag = 'output window, operand 0, single buffered']
    %8 = vsyncpa [#allocation3], 0
    %9 = vsyncpa [#allocation6], 0
    %10 = vsyncpa [#allocation4], 0
    // Predicated region
    $region2: #{tpu_custom_call.1} parent=1 // pred_check
      _
    $region3: #{tpu_custom_call.1} parent=1 // pred_check_branch
      %12 = sbr.rel (0) target = $region5
    $region4: #{tpu_custom_call.1} parent=1 // pred_region
      %s14 = ssub.s32 128, 128
      %15 = vsyncadd [#allocation3], %s14
      %s17 = sshll.u32 [#allocation2], 4
      %s18 = int_to_ptr.vmem [resolvable:$true] %s17
      %20 = dma.hbm_to_vmem [thread:$0]  %s0, 128, %s18, [#allocation3]
    $region5: #{tpu_custom_call.1} parent=1 // pred_fallthru
      _
    // Predicated region
    $region6: #{tpu_custom_call.1} parent=1 // pred_check
      _
    $region7: #{tpu_custom_call.1} parent=1 // pred_check_branch
      %22 = sbr.rel (0) target = $region9
    $region8: #{tpu_custom_call.1} parent=1 // pred_region
      %s24 = ssub.s32 4096, 4096
      %25 = vsyncadd [#allocation6], %s24
      %s26 = sshll.u32 [#allocation5], 4
      %s27 = int_to_ptr.vmem [resolvable:$true] %s26
      %32 = dma.hbm_to_vmem [thread:$0]  %s1, 4096, %s27, [#allocation6], 64, 64, 4
    $region9: #{tpu_custom_call.1} parent=1 // pred_fallthru
      _
    // Predicated region
    $region10: #{tpu_custom_call.1} parent=1 // pred_check
      _
    $region11: #{tpu_custom_call.1} parent=1 // pred_check_branch
      %34 = sbr.rel (0) target = $region13
    $region12: #{tpu_custom_call.1} parent=1 // pred_region
      %s36 = ssub.s32 64, 64
      %37 = vsyncadd [#allocation6], %s36
      %s38 = sshll.u32 [#allocation7], 4
      %s39 = int_to_ptr.vmem [resolvable:$true] %s38
      %44 = dma.hbm_to_vmem [thread:$0]  %s2, 64, %s39, [#allocation6], 16, 16, 1
    $region13: #{tpu_custom_call.1} parent=1 // pred_fallthru
      _
    // Predicated region
    $region14: #{tpu_custom_call.1} parent=1 // pred_check
      _
    $region15: #{tpu_custom_call.1} parent=1 // pred_check_branch
      %46 = sbr.rel (0) target = $region17
    $region16: #{tpu_custom_call.1} parent=1 // pred_region
      %47 = dma.done [#allocation3], 128
    $region17: #{tpu_custom_call.1} parent=1 // pred_fallthru
      _
    // Predicated region
    $region18: #{tpu_custom_call.1} parent=1 // pred_check
      _
    $region19: #{tpu_custom_call.1} parent=1 // pred_check_branch
      %49 = sbr.rel (0) target = $region21
    $region20: #{tpu_custom_call.1} parent=1 // pred_region
      %50 = dma.done [#allocation6], 4096
    $region21: #{tpu_custom_call.1} parent=1 // pred_fallthru
      _
    // Predicated region
    $region22: #{tpu_custom_call.1} parent=1 // pred_check
      _
    $region23: #{tpu_custom_call.1} parent=1 // pred_check_branch
      %52 = sbr.rel (0) target = $region25
    $region24: #{tpu_custom_call.1} parent=1 // pred_region
      %53 = dma.done [#allocation6], 64
    $region25: #{tpu_custom_call.1} parent=1 // pred_fallthru
      _
    %v55 = vld [vmem:[#allocation2] sm:$0xff]
    %v56 = vpack.c.bf16 %v55, %v55
    %v57 = vld [vmem:[#allocation5] sm:$0xf]
    %v58 = vld [vmem:[#allocation5 + $0x4] sm:$0xf]
    %v59 = vld [vmem:[#allocation7] sm:$0x1]
    %v61 = vlaneseq
    %v62 = vshrl.u32 %v61, 7
    %v63 = vsub.s32 0, %v62
    %v64 = vrot.slane %v59, %v63
    %v68 = vunpack.c.l.b16 %v57
    %v69 = vunpack.c.l.b16 %v58
    %v70 = vpack.c.b16 %v69, %v68
    %vm72 = vcmask 130048
    %v74 = vsel %vm72, %v56, 0
    %76 = vmatprep.subr.bf16.mxu0 0
    %77 = vmatpush1.bf16.msra.mxu0 0
    %78 = vmatprep.subr.bf16.mxu0 0
    %79 = vmatpush1.bf16.msra.mxu0 0
    %80 = vmatprep.subr.bf16.mxu0 0
    %81 = vmatpush1.bf16.msra.mxu0 0
    %82 = vmatprep.subr.bf16.mxu0 0
    %83 = vmatpush1.bf16.msra.mxu0 0
    %84 = vmatprep.subr.bf16.mxu0 0
    %85 = vmatpush1.bf16.msra.mxu0 0
    %86 = vmatprep.subr.bf16.mxu0 0
    %87 = vmatpush1.bf16.msra.mxu0 0
    %88 = vmatprep.subr.bf16.mxu0 0
    %89 = vmatpush1.bf16.msra.mxu0 0
    %90 = vmatprep.subr.bf16.mxu0 0
    %91 = vmatpush1.bf16.msra.mxu0 %v70
    %92 = vmatprep.subr.bf16.mxu0 0
    %93 = vmatpush2.bf16.msra.mxu0 0
    %94 = vmatprep.subr.bf16.mxu0 0
    %95 = vmatpush2.bf16.msra.mxu0 0
    %96 = vmatprep.subr.bf16.mxu0 0
    %97 = vmatpush2.bf16.msra.mxu0 0
    %98 = vmatprep.subr.bf16.mxu0 0
    %99 = vmatpush2.bf16.msra.mxu0 0
    %100 = vmatprep.subr.bf16.mxu0 0
    %101 = vmatpush2.bf16.msra.mxu0 0
    %102 = vmatprep.subr.bf16.mxu0 0
    %103 = vmatpush2.bf16.msra.mxu0 0
    %104 = vmatprep.subr.bf16.mxu0 0
    %105 = vmatpush2.bf16.msra.mxu0 0
    %106 = vmatprep.subr.bf16.mxu0 0
    %107 = vmatpush2.bf16.msra.mxu0 0
    %108 = vmatprep.mubr.bf16.mxu0 0
    %109 = vmatmul.mubr.bf16.gmra.mxu0 %v74
    %v110 = vpop.f32.mrf.mxu0
    %v111 = vadd.f32 %v64, %v110
    %v112 = vpop.f32.mrf.mxu0
    %v113 = vpop.f32.mrf.mxu0
    %v114 = vpop.f32.mrf.mxu0
    %115 = vdwg.mxu0
    %v116 = vmax.f32 %v111, 0.0
    %v117 = vpack.c.bf16 %v116, %v116
    %s118 = scalar_lea.vmem [#allocation5], 64
    %v119 = vld [vmem:[%s118] sm:$0xf]
    %v120 = vld [vmem:[%s118 + $0x4] sm:$0xf]
    %v121 = vld [vmem:[%s118 + $0x8] sm:$0xf]
    %v122 = vld [vmem:[%s118 + $0xc] sm:$0xf]
    %v123 = vld [vmem:[%s118 + $0x10] sm:$0xf]
    %v124 = vld [vmem:[%s118 + $0x14] sm:$0xf]
    %v125 = vld [vmem:[%s118 + $0x18] sm:$0xf]
    %v126 = vld [vmem:[%s118 + $0x1c] sm:$0xf]
    %v127 = vld [vmem:[%s118 + $0x20] sm:$0xf]
    %v128 = vld [vmem:[%s118 + $0x24] sm:$0xf]
    %v129 = vld [vmem:[%s118 + $0x28] sm:$0xf]
    %v130 = vld [vmem:[%s118 + $0x2c] sm:$0xf]
    %v131 = vld [vmem:[%s118 + $0x30] sm:$0xf]
    %v132 = vld [vmem:[%s118 + $0x34] sm:$0xf]
    %v133 = vld [vmem:[%s118 + $0x38] sm:$0xf]
    %v134 = vld [vmem:[%s118 + $0x3c] sm:$0xf]
    %s135 = scalar_lea.vmem [#allocation7], 1
    %v136 = vld [vmem:[%s135] sm:$0x1]
    %v138 = vlaneseq
    %v139 = vshrl.u32 %v138, 7
    %v140 = vsub.s32 0, %v139
    %v141 = vrot.slane %v136, %v140
    %v159 = vunpack.c.l.b16 %v119
    %v160 = vunpack.c.l.b16 %v120
    %v161 = vunpack.c.l.b16 %v121
    %v162 = vunpack.c.l.b16 %v122
    %v163 = vunpack.c.l.b16 %v123
    %v164 = vunpack.c.l.b16 %v124
    %v165 = vunpack.c.l.b16 %v125
    %v166 = vunpack.c.l.b16 %v126
    %v167 = vunpack.c.l.b16 %v127
    %v168 = vunpack.c.l.b16 %v128
    %v169 = vunpack.c.l.b16 %v129
    %v170 = vunpack.c.l.b16 %v130
    %v171 = vunpack.c.l.b16 %v131
    %v172 = vunpack.c.l.b16 %v132
    %v173 = vunpack.c.l.b16 %v133
    %v174 = vunpack.c.l.b16 %v134
    %v175 = vpack.c.b16 %v160, %v159
    %v176 = vpack.c.b16 %v162, %v161
    %v177 = vpack.c.b16 %v164, %v163
    %v178 = vpack.c.b16 %v166, %v165
    %v179 = vpack.c.b16 %v168, %v167
    %v180 = vpack.c.b16 %v170, %v169
    %v181 = vpack.c.b16 %v172, %v171
    %v182 = vpack.c.b16 %v174, %v173
    %191 = vmatprep.subr.bf16.mxu0 0
    %192 = vmatpush1.bf16.msra.mxu0 %v182
    %193 = vmatprep.subr.bf16.mxu0 0
    %194 = vmatpush1.bf16.msra.mxu0 %v181
    %195 = vmatprep.subr.bf16.mxu0 0
    %196 = vmatpush1.bf16.msra.mxu0 %v180
    %197 = vmatprep.subr.bf16.mxu0 0
    %198 = vmatpush1.bf16.msra.mxu0 %v179
    %199 = vmatprep.subr.bf16.mxu0 0
    %200 = vmatpush1.bf16.msra.mxu0 %v178
    %201 = vmatprep.subr.bf16.mxu0 0
    %202 = vmatpush1.bf16.msra.mxu0 %v177
    %203 = vmatprep.subr.bf16.mxu0 0
    %204 = vmatpush1.bf16.msra.mxu0 %v176
    %205 = vmatprep.subr.bf16.mxu0 0
    %206 = vmatpush1.bf16.msra.mxu0 %v175
    %207 = vmatprep.subr.bf16.mxu0 0
    %208 = vmatpush2.bf16.msra.mxu0 0
    %209 = vmatprep.subr.bf16.mxu0 0
    %210 = vmatpush2.bf16.msra.mxu0 0
    %211 = vmatprep.subr.bf16.mxu0 0
    %212 = vmatpush2.bf16.msra.mxu0 0
    %213 = vmatprep.subr.bf16.mxu0 0
    %214 = vmatpush2.bf16.msra.mxu0 0
    %215 = vmatprep.subr.bf16.mxu0 0
    %216 = vmatpush2.bf16.msra.mxu0 0
    %217 = vmatprep.subr.bf16.mxu0 0
    %218 = vmatpush2.bf16.msra.mxu0 0
    %219 = vmatprep.subr.bf16.mxu0 0
    %220 = vmatpush2.bf16.msra.mxu0 0
    %221 = vmatprep.subr.bf16.mxu0 0
    %222 = vmatpush2.bf16.msra.mxu0 0
    %223 = vmatprep.mubr.bf16.mxu0 0
    %224 = vmatmul.mubr.bf16.gmra.mxu0 %v117
    %v225 = vpop.f32.mrf.mxu0
    %v226 = vadd.f32 %v141, %v225
    %v227 = vpop.f32.mrf.mxu0
    %v228 = vpop.f32.mrf.mxu0
    %v229 = vpop.f32.mrf.mxu0
    %230 = vdwg.mxu0
    %v231 = vmax.f32 %v226, 0.0
    %v232 = vpack.c.bf16 %v231, %v231
    %s233 = scalar_lea.vmem [#allocation5], 128
    %v234 = vld [vmem:[%s233] sm:$0xf]
    %v235 = vld [vmem:[%s233 + $0x4] sm:$0xf]
    %v236 = vld [vmem:[%s233 + $0x8] sm:$0xf]
    %v237 = vld [vmem:[%s233 + $0xc] sm:$0xf]
    %v238 = vld [vmem:[%s233 + $0x10] sm:$0xf]
    %v239 = vld [vmem:[%s233 + $0x14] sm:$0xf]
    %v240 = vld [vmem:[%s233 + $0x18] sm:$0xf]
    %v241 = vld [vmem:[%s233 + $0x1c] sm:$0xf]
    %v242 = vld [vmem:[%s233 + $0x20] sm:$0xf]
    %v243 = vld [vmem:[%s233 + $0x24] sm:$0xf]
    %v244 = vld [vmem:[%s233 + $0x28] sm:$0xf]
    %v245 = vld [vmem:[%s233 + $0x2c] sm:$0xf]
    %v246 = vld [vmem:[%s233 + $0x30] sm:$0xf]
    %v247 = vld [vmem:[%s233 + $0x34] sm:$0xf]
    %v248 = vld [vmem:[%s233 + $0x38] sm:$0xf]
    %v249 = vld [vmem:[%s233 + $0x3c] sm:$0xf]
    %s250 = scalar_lea.vmem [#allocation7], 2
    %v251 = vld [vmem:[%s250] sm:$0x1]
    %v253 = vlaneseq
    %v254 = vshrl.u32 %v253, 7
    %v255 = vsub.s32 0, %v254
    %v256 = vrot.slane %v251, %v255
    %v274 = vunpack.c.l.b16 %v234
    %v275 = vunpack.c.l.b16 %v235
    %v276 = vunpack.c.l.b16 %v236
    %v277 = vunpack.c.l.b16 %v237
    %v278 = vunpack.c.l.b16 %v238
    %v279 = vunpack.c.l.b16 %v239
    %v280 = vunpack.c.l.b16 %v240
    %v281 = vunpack.c.l.b16 %v241
    %v282 = vunpack.c.l.b16 %v242
    %v283 = vunpack.c.l.b16 %v243
    %v284 = vunpack.c.l.b16 %v244
    %v285 = vunpack.c.l.b16 %v245
    %v286 = vunpack.c.l.b16 %v246
    %v287 = vunpack.c.l.b16 %v247
    %v288 = vunpack.c.l.b16 %v248
    %v289 = vunpack.c.l.b16 %v249
    %v290 = vpack.c.b16 %v275, %v274
    %v291 = vpack.c.b16 %v277, %v276
    %v292 = vpack.c.b16 %v279, %v278
    %v293 = vpack.c.b16 %v281, %v280
    %v294 = vpack.c.b16 %v283, %v282
    %v295 = vpack.c.b16 %v285, %v284
    %v296 = vpack.c.b16 %v287, %v286
    %v297 = vpack.c.b16 %v289, %v288
    %306 = vmatprep.subr.bf16.mxu0 0
    %307 = vmatpush1.bf16.msra.mxu0 %v297
    %308 = vmatprep.subr.bf16.mxu0 0
    %309 = vmatpush1.bf16.msra.mxu0 %v296
    %310 = vmatprep.subr.bf16.mxu0 0
    %311 = vmatpush1.bf16.msra.mxu0 %v295
    %312 = vmatprep.subr.bf16.mxu0 0
    %313 = vmatpush1.bf16.msra.mxu0 %v294
    %314 = vmatprep.subr.bf16.mxu0 0
    %315 = vmatpush1.bf16.msra.mxu0 %v293
    %316 = vmatprep.subr.bf16.mxu0 0
    %317 = vmatpush1.bf16.msra.mxu0 %v292
    %318 = vmatprep.subr.bf16.mxu0 0
    %319 = vmatpush1.bf16.msra.mxu0 %v291
    %320 = vmatprep.subr.bf16.mxu0 0
    %321 = vmatpush1.bf16.msra.mxu0 %v290
    %322 = vmatprep.subr.bf16.mxu0 0
    %323 = vmatpush2.bf16.msra.mxu0 0
    %324 = vmatprep.subr.bf16.mxu0 0
    %325 = vmatpush2.bf16.msra.mxu0 0
    %326 = vmatprep.subr.bf16.mxu0 0
    %327 = vmatpush2.bf16.msra.mxu0 0
    %328 = vmatprep.subr.bf16.mxu0 0
    %329 = vmatpush2.bf16.msra.mxu0 0
    %330 = vmatprep.subr.bf16.mxu0 0
    %331 = vmatpush2.bf16.msra.mxu0 0
    %332 = vmatprep.subr.bf16.mxu0 0
    %333 = vmatpush2.bf16.msra.mxu0 0
    %334 = vmatprep.subr.bf16.mxu0 0
    %335 = vmatpush2.bf16.msra.mxu0 0
    %336 = vmatprep.subr.bf16.mxu0 0
    %337 = vmatpush2.bf16.msra.mxu0 0
    %338 = vmatprep.mubr.bf16.mxu0 0
    %339 = vmatmul.mubr.bf16.gmra.mxu0 %v232
    %v340 = vpop.f32.mrf.mxu0
    %v341 = vadd.f32 %v256, %v340
    %v342 = vpop.f32.mrf.mxu0
    %v343 = vpop.f32.mrf.mxu0
    %v344 = vpop.f32.mrf.mxu0
    %345 = vdwg.mxu0
    %v346 = vmax.f32 %v341, 0.0
    %v347 = vpack.c.bf16 %v346, %v346
    %s348 = scalar_lea.vmem [#allocation5], 192
    %v349 = vld [vmem:[%s348] sm:$0xf]
    %v350 = vld [vmem:[%s348 + $0x4] sm:$0xf]
    %v351 = vld [vmem:[%s348 + $0x8] sm:$0xf]
    %v352 = vld [vmem:[%s348 + $0xc] sm:$0xf]
    %v353 = vld [vmem:[%s348 + $0x10] sm:$0xf]
    %v354 = vld [vmem:[%s348 + $0x14] sm:$0xf]
    %v355 = vld [vmem:[%s348 + $0x18] sm:$0xf]
    %v356 = vld [vmem:[%s348 + $0x1c] sm:$0xf]
    %v357 = vld [vmem:[%s348 + $0x20] sm:$0xf]
    %v358 = vld [vmem:[%s348 + $0x24] sm:$0xf]
    %v359 = vld [vmem:[%s348 + $0x28] sm:$0xf]
    %v360 = vld [vmem:[%s348 + $0x2c] sm:$0xf]
    %v361 = vld [vmem:[%s348 + $0x30] sm:$0xf]
    %v362 = vld [vmem:[%s348 + $0x34] sm:$0xf]
    %v363 = vld [vmem:[%s348 + $0x38] sm:$0xf]
    %v364 = vld [vmem:[%s348 + $0x3c] sm:$0xf]
    %s365 = scalar_lea.vmem [#allocation7], 3
    %v366 = vld [vmem:[%s365] sm:$0x1]
    %v368 = vlaneseq
    %v369 = vshrl.u32 %v368, 7
    %v370 = vsub.s32 0, %v369
    %v371 = vrot.slane %v366, %v370
    %v389 = vunpack.c.l.b16 %v349
    %v390 = vunpack.c.l.b16 %v350
    %v391 = vunpack.c.l.b16 %v351
    %v392 = vunpack.c.l.b16 %v352
    %v393 = vunpack.c.l.b16 %v353
    %v394 = vunpack.c.l.b16 %v354
    %v395 = vunpack.c.l.b16 %v355
    %v396 = vunpack.c.l.b16 %v356
    %v397 = vunpack.c.l.b16 %v357
    %v398 = vunpack.c.l.b16 %v358
    %v399 = vunpack.c.l.b16 %v359
    %v400 = vunpack.c.l.b16 %v360
    %v401 = vunpack.c.l.b16 %v361
    %v402 = vunpack.c.l.b16 %v362
    %v403 = vunpack.c.l.b16 %v363
    %v404 = vunpack.c.l.b16 %v364
    %v405 = vpack.c.b16 %v390, %v389
    %v406 = vpack.c.b16 %v392, %v391
    %v407 = vpack.c.b16 %v394, %v393
    %v408 = vpack.c.b16 %v396, %v395
    %v409 = vpack.c.b16 %v398, %v397
    %v410 = vpack.c.b16 %v400, %v399
    %v411 = vpack.c.b16 %v402, %v401
    %v412 = vpack.c.b16 %v404, %v403
    %421 = vmatprep.subr.bf16.mxu0 0
    %422 = vmatpush1.bf16.msra.mxu0 %v412
    %423 = vmatprep.subr.bf16.mxu0 0
    %424 = vmatpush1.bf16.msra.mxu0 %v411
    %425 = vmatprep.subr.bf16.mxu0 0
    %426 = vmatpush1.bf16.msra.mxu0 %v410
    %427 = vmatprep.subr.bf16.mxu0 0
    %428 = vmatpush1.bf16.msra.mxu0 %v409
    %429 = vmatprep.subr.bf16.mxu0 0
    %430 = vmatpush1.bf16.msra.mxu0 %v408
    %431 = vmatprep.subr.bf16.mxu0 0
    %432 = vmatpush1.bf16.msra.mxu0 %v407
    %433 = vmatprep.subr.bf16.mxu0 0
    %434 = vmatpush1.bf16.msra.mxu0 %v406
    %435 = vmatprep.subr.bf16.mxu0 0
    %436 = vmatpush1.bf16.msra.mxu0 %v405
    %437 = vmatprep.subr.bf16.mxu0 0
    %438 = vmatpush2.bf16.msra.mxu0 0
    %439 = vmatprep.subr.bf16.mxu0 0
    %440 = vmatpush2.bf16.msra.mxu0 0
    %441 = vmatprep.subr.bf16.mxu0 0
    %442 = vmatpush2.bf16.msra.mxu0 0
    %443 = vmatprep.subr.bf16.mxu0 0
    %444 = vmatpush2.bf16.msra.mxu0 0
    %445 = vmatprep.subr.bf16.mxu0 0
    %446 = vmatpush2.bf16.msra.mxu0 0
    %447 = vmatprep.subr.bf16.mxu0 0
    %448 = vmatpush2.bf16.msra.mxu0 0
    %449 = vmatprep.subr.bf16.mxu0 0
    %450 = vmatpush2.bf16.msra.mxu0 0
    %451 = vmatprep.subr.bf16.mxu0 0
    %452 = vmatpush2.bf16.msra.mxu0 0
    %453 = vmatprep.mubr.bf16.mxu0 0
    %454 = vmatmul.mubr.bf16.gmra.mxu0 %v347
    %v455 = vpop.f32.mrf.mxu0
    %v456 = vadd.f32 %v371, %v455
    %v457 = vpop.f32.mrf.mxu0
    %v458 = vpop.f32.mrf.mxu0
    %v459 = vpop.f32.mrf.mxu0
    %460 = vdwg.mxu0
    %vm461 = vcmask 261120
    %462 = vst.msk [vmem:[#allocation8] sm:$0xff] %vm461, %v456
    // Predicated region
    $region26: #{tpu_custom_call.1} parent=1 // pred_check
      _
    $region27: #{tpu_custom_call.1} parent=1 // pred_check_branch
      %464 = sbr.rel (0) target = $region29
    $region28: #{tpu_custom_call.1} parent=1 // pred_region
      %s466 = ssub.s32 128, 128
      %467 = vsyncadd [#allocation4], %s466
      %s469 = sshll.u32 [#allocation8], 4
      %s470 = int_to_ptr.vmem [resolvable:$true] %s469
      %472 = dma.vmem_to_hbm [thread:$0]  %s470, 128, %s3, [#allocation4]
    $region29: #{tpu_custom_call.1} parent=1 // pred_fallthru
      _
    // Predicated region
    $region30: #{tpu_custom_call.1} parent=1 // pred_check
      _
    $region31: #{tpu_custom_call.1} parent=1 // pred_check_branch
      %474 = sbr.rel (0) target = $region33
    $region32: #{tpu_custom_call.1} parent=1 // pred_region
      %475 = dma.done [#allocation4], 128
    $region33: #{tpu_custom_call.1} parent=1 // pred_fallthru
      _
    %476 = vsyncpa [#allocation3], 1
    %477 = vsyncpa [#allocation6], 1
    %478 = vsyncpa [#allocation4], 1

</llo_original>
